<compile_context>
chip_gen: v6e
topology: v6e:2x2x1
jax: 0.10.0
libtpu: 0.0.40
codegen_flags: <defaults>
</compile_context>

<pallas_src>
import jax
import jax.numpy as jnp
from jax.experimental import pallas as pl
from jax.experimental.pallas import tpu as pltpu


def nce_contrastive_loss(vis_feat, text_feat, temp, *,
                         block_rows=256, block_cols=256):
    """Pallas implementation of NCEContrastiveLoss.forward.

    vis_feat:  (B, D) float32 / bfloat16
    text_feat: (B, D) float32 / bfloat16
    temp:      python scalar temperature (compile-time constant)
    """
    B, D = vis_feat.shape
    assert text_feat.shape == (B, D)

    tI = min(block_rows, B)
    tJ = min(block_cols, B)
    assert B % tI == 0 and B % tJ == 0, "batch must be divisible by the tile sizes"
    n_i, n_j = B // tI, B // tJ
    inv_temp = 1.0 / float(temp)

    def kernel(vis_ref, text_ref, row_lse_ref, col_stats_ref, m_scr, l_scr):
        j = pl.program_id(1)
        n_jj = pl.num_programs(1)

        # (tI, tJ) tile of the logit matrix: contract over D on the MXU with
        # f32 accumulation, inputs kept in their native dtype.
        s = jax.lax.dot_general(
            vis_ref[...], text_ref[...],
            dimension_numbers=(((1,), (1,)), ((), ())),
            preferred_element_type=jnp.float32,
        ) * inv_temp                                               # (tI, tJ)

        # ---- per-tile column partials (combined across i in the wrapper) ----
        cmax = jnp.max(s, axis=0, keepdims=True)                   # (1, tJ)
        csum = jnp.sum(jnp.exp(s - cmax), axis=0, keepdims=True)   # (1, tJ)
        rid = jax.lax.broadcasted_iota(jnp.int32, (8, tJ), 0)
        # sublane 0 carries the tile column max, sublanes 1..7 the exp-sum.
        col_stats_ref[0] = jnp.where(
            rid < 1,
            jnp.broadcast_to(cmax, (8, tJ)),
            jnp.broadcast_to(csum, (8, tJ)),
        )

        # ---- online row logsumexp across the j (reduction) axis ----
        @pl.when(j == 0)
        def _init():
            m_scr[...] = jnp.full(m_scr.shape, -jnp.inf, dtype=jnp.float32)
            l_scr[...] = jnp.zeros(l_scr.shape, dtype=jnp.float32)

        m_prev = m_scr[...]                                        # (tI, 1)
        m_new = jnp.maximum(m_prev, jnp.max(s, axis=1, keepdims=True))
        alpha = jnp.exp(m_prev - m_new)                            # == 0 at j == 0
        p_sum = jnp.sum(jnp.exp(s - m_new), axis=1, keepdims=True)
        l_scr[...] = alpha * l_scr[...] + p_sum
        m_scr[...] = m_new

        @pl.when(j == n_jj - 1)
        def _finalize():
            row_lse_ref[...] = m_scr[...] + jnp.log(l_scr[...])

    row_lse, col_stats = pl.pallas_call(
        kernel,
        out_shape=(
            jax.ShapeDtypeStruct((B, 1), jnp.float32),        # row logsumexp
            jax.ShapeDtypeStruct((n_i, 8, B), jnp.float32),   # column partials
        ),
        grid=(n_i, n_j),
        in_specs=[
            pl.BlockSpec((tI, D), lambda i, j: (i, 0)),
            pl.BlockSpec((tJ, D), lambda i, j: (j, 0)),
        ],
        out_specs=(
            pl.BlockSpec((tI, 1), lambda i, j: (i, 0)),
            pl.BlockSpec((1, 8, tJ), lambda i, j: (i, 0, j)),
        ),
        scratch_shapes=[
            pltpu.VMEM((tI, 1), jnp.float32),   # running row max
            pltpu.VMEM((tI, 1), jnp.float32),   # running row exp-sum
        ],
        compiler_params=pltpu.CompilerParams(
            dimension_semantics=("parallel", "arbitrary"),
            vmem_limit_bytes=32 * 1024 * 1024,
        ),
    )(vis_feat, text_feat)

    # ---- tiny O(B*n_i) / O(B*D) epilogue in plain JAX ----
    row_lse = row_lse[:, 0]                                        # (B,)
    colmax_p = col_stats[:, 0, :]                                  # (n_i, B)
    colsum_p = col_stats[:, 1, :]                                  # (n_i, B)
    col_shift = jnp.max(colmax_p, axis=0)                          # (B,)
    col_sum = jnp.sum(colsum_p * jnp.exp(colmax_p - col_shift[None, :]), axis=0)
    col_lse = col_shift + jnp.log(col_sum)                         # (B,)

    # diagonal logits S[i, i] = <vis_i, text_i> / temp
    diag = jnp.sum(vis_feat.astype(jnp.float32) * text_feat.astype(jnp.float32),
                   axis=-1) * inv_temp                             # (B,)

    # mean_i CE(t2v) + mean_j CE(v2t)
    return jnp.mean(row_lse + col_lse - 2.0 * diag)


def _reference_loss(vis_feat, text_feat, temp):
    """Pure-JAX mirror of the PyTorch module (for verification)."""
    logits = jnp.matmul(vis_feat.astype(jnp.float32),
                        text_feat.astype(jnp.float32).T) / temp
    labels = jnp.arange(logits.shape[0])
    t2v_ce = -jax.nn.log_softmax(logits, axis=-1)[labels, labels]
    v2t_ce = -jax.nn.log_softmax(logits.T, axis=-1)[labels, labels]
    return jnp.mean(t2v_ce) + jnp.mean(v2t_ce)


if __name__ == "__main__":
    key = jax.random.PRNGKey(0)
    k1, k2 = jax.random.split(key)

    B, D = 256, 128            # small, but multi-tile (2x2 grid with 128-tiles)
    temp = 0.07                # cfg.temp

    vis = jax.random.normal(k1, (B, D), dtype=jnp.float32)
    txt = jax.random.normal(k2, (B, D), dtype=jnp.float32)
    vis = vis / jnp.linalg.norm(vis, axis=-1, keepdims=True)
    txt = txt / jnp.linalg.norm(txt, axis=-1, keepdims=True)
    # keep features in bf16 over the wire (kernel accumulates in f32 on the MXU)
    vis = vis.astype(jnp.bfloat16)
    txt = txt.astype(jnp.bfloat16)

    loss = nce_contrastive_loss(vis, txt, temp, block_rows=128, block_cols=128)
    loss = jax.block_until_ready(loss)

    ref = _reference_loss(vis, txt, temp)
    assert jnp.allclose(loss, ref, rtol=1e-3, atol=1e-3), (float(loss), float(ref))

    print("KERNEL_OK")
</pallas_src>

<mosaic_0001>
module attributes {stable_mosaic.version = 11 : i64} {
  func.func @kernel(%arg0: i32, %arg1: i32, %arg2: memref<128x128xbf16, #tpu.memory_space<vmem>>, %arg3: memref<128x128xbf16, #tpu.memory_space<vmem>>, %arg4: memref<128x1xf32, #tpu.memory_space<vmem>>, %arg5: memref<1x8x128xf32, #tpu.memory_space<vmem>>, %arg6: memref<128x1xf32, #tpu.memory_space<vmem>>, %arg7: memref<128x1xf32, #tpu.memory_space<vmem>>) attributes {dimension_semantics = [#tpu.dimension_semantics<parallel>, #tpu.dimension_semantics<arbitrary>], iteration_bounds = array<i64: 2, 2>, scalar_prefetch = 0 : i64, scratch_operands = 2 : i64, tpu.core_type = #tpu.core_type<tc>, window_params = [{transform_indices = @transform_0, window_bounds = array<i64: 128, 128>}, {transform_indices = @transform_1, window_bounds = array<i64: 128, 128>}, {transform_indices = @transform_2, window_bounds = array<i64: 128, 1>}, {transform_indices = @transform_3, window_bounds = array<i64: 1, 8, 128>}]} {
    %c0 = arith.constant 0 : index
    %c0_0 = arith.constant 0 : index
    %0 = vector.load %arg2[%c0, %c0_0] : memref<128x128xbf16, #tpu.memory_space<vmem>>, vector<128x128xbf16>
    %c0_1 = arith.constant 0 : index
    %c0_2 = arith.constant 0 : index
    %1 = vector.load %arg3[%c0_1, %c0_2] : memref<128x128xbf16, #tpu.memory_space<vmem>>, vector<128x128xbf16>
    %cst = arith.constant dense<0.000000e+00> : vector<128x128xf32>
    %2 = tpu.matmul %0, %1, %cst {dimension_numbers = #tpu.dot_dimension_numbers<[1], [1], [0], [0], [0, 0, 1, 0], [], []>} : vector<128x128xbf16>, vector<128x128xbf16>, vector<128x128xf32> -> vector<128x128xf32>
    %cst_3 = arith.constant 14.2857141 : f32
    %3 = vector.broadcast %cst_3 : f32 to vector<128x128xf32>
    %4 = arith.mulf %2, %3 : vector<128x128xf32>
    %cst_4 = arith.constant dense<0xFF800000> : vector<128xf32>
    %5 = vector.multi_reduction <maximumf>, %4, %cst_4 [0] : vector<128x128xf32> to vector<128xf32>
    %6 = vector.shape_cast %5 : vector<128xf32> to vector<1x128xf32>
    %7 = vector.broadcast %6 : vector<1x128xf32> to vector<128x128xf32>
    %8 = arith.subf %4, %7 : vector<128x128xf32>
    %9 = math.exp %8 : vector<128x128xf32>
    %cst_5 = arith.constant dense<0.000000e+00> : vector<128xf32>
    %10 = vector.multi_reduction <add>, %9, %cst_5 [0] : vector<128x128xf32> to vector<128xf32>
    %11 = vector.shape_cast %10 : vector<128xf32> to vector<1x128xf32>
    %12 = tpu.iota {dimensions = array<i32: 0>} : vector<8x128xi32>
    %c1_i32 = arith.constant 1 : i32
    %13 = vector.broadcast %c1_i32 : i32 to vector<8x128xi32>
    %14 = arith.cmpi slt, %12, %13 : vector<8x128xi32>
    %15 = vector.shape_cast %6 : vector<1x128xf32> to vector<1x128xf32>
    %16 = vector.broadcast %15 : vector<1x128xf32> to vector<8x128xf32>
    %17 = vector.shape_cast %11 : vector<1x128xf32> to vector<1x128xf32>
    %18 = vector.broadcast %17 : vector<1x128xf32> to vector<8x128xf32>
    %19 = arith.select %14, %16, %18 : vector<8x128xi1>, vector<8x128xf32>
    %c0_6 = arith.constant 0 : index
    %c0_7 = arith.constant 0 : index
    %c0_8 = arith.constant 0 : index
    %20 = vector.load %arg5[%c0_6, %c0_7, %c0_8] : memref<1x8x128xf32, #tpu.memory_space<vmem>>, vector<1x8x128xf32>
    %21 = vector.shape_cast %20 : vector<1x8x128xf32> to vector<8x128xf32>
    %22 = vector.shape_cast %19 : vector<8x128xf32> to vector<1x8x128xf32>
    tpu.vector_store %arg5[%c0_6, %c0_7, %c0_8], %22 {strides = array<i32>} : memref<1x8x128xf32, #tpu.memory_space<vmem>>, vector<1x8x128xf32>,
    %c0_i32 = arith.constant 0 : i32
    %23 = arith.cmpi eq, %arg1, %c0_i32 : i32
    %24 = arith.extui %23 : i1 to i32
    %c0_i32_9 = arith.constant 0 : i32
    %25 = arith.cmpi ne, %24, %c0_i32_9 : i32
    scf.if %25 {
      %cst_22 = arith.constant 0xFF800000 : f32
      %45 = vector.broadcast %cst_22 : f32 to vector<128x1xf32>
      %c0_23 = arith.constant 0 : index
      %c0_24 = arith.constant 0 : index
      %46 = vector.load %arg6[%c0_23, %c0_24] : memref<128x1xf32, #tpu.memory_space<vmem>>, vector<128x1xf32>
      tpu.vector_store %arg6[%c0_23, %c0_24], %45 {strides = array<i32>} : memref<128x1xf32, #tpu.memory_space<vmem>>, vector<128x1xf32>,
      %cst_25 = arith.constant 0.000000e+00 : f32
      %47 = vector.broadcast %cst_25 : f32 to vector<128x1xf32>
      %c0_26 = arith.constant 0 : index
      %c0_27 = arith.constant 0 : index
      %48 = vector.load %arg7[%c0_26, %c0_27] : memref<128x1xf32, #tpu.memory_space<vmem>>, vector<128x1xf32>
      tpu.vector_store %arg7[%c0_26, %c0_27], %47 {strides = array<i32>} : memref<128x1xf32, #tpu.memory_space<vmem>>, vector<128x1xf32>,
    } else {
    }
    %c0_10 = arith.constant 0 : index
    %c0_11 = arith.constant 0 : index
    %26 = vector.load %arg6[%c0_10, %c0_11] : memref<128x1xf32, #tpu.memory_space<vmem>>, vector<128x1xf32>
    %cst_12 = arith.constant dense<0xFF800000> : vector<128xf32>
    %27 = vector.multi_reduction <maximumf>, %4, %cst_12 [1] : vector<128x128xf32> to vector<128xf32>
    %28 = vector.shape_cast %27 : vector<128xf32> to vector<128x1xf32>
    %29 = arith.maximumf %26, %28 : vector<128x1xf32>
    %30 = arith.subf %26, %29 : vector<128x1xf32>
    %31 = math.exp %30 : vector<128x1xf32>
    %32 = vector.broadcast %29 : vector<128x1xf32> to vector<128x128xf32>
    %33 = arith.subf %4, %32 : vector<128x128xf32>
    %34 = math.exp %33 : vector<128x128xf32>
    %cst_13 = arith.constant dense<0.000000e+00> : vector<128xf32>
    %35 = vector.multi_reduction <add>, %34, %cst_13 [1] : vector<128x128xf32> to vector<128xf32>
    %36 = vector.shape_cast %35 : vector<128xf32> to vector<128x1xf32>
    %c0_14 = arith.constant 0 : index
    %c0_15 = arith.constant 0 : index
    %37 = vector.load %arg7[%c0_14, %c0_15] : memref<128x1xf32, #tpu.memory_space<vmem>>, vector<128x1xf32>
    %38 = arith.mulf %31, %37 : vector<128x1xf32>
    %39 = arith.addf %38, %36 : vector<128x1xf32>
    %c0_16 = arith.constant 0 : index
    %c0_17 = arith.constant 0 : index
    %40 = vector.load %arg7[%c0_16, %c0_17] : memref<128x1xf32, #tpu.memory_space<vmem>>, vector<128x1xf32>
    tpu.vector_store %arg7[%c0_16, %c0_17], %39 {strides = array<i32>} : memref<128x1xf32, #tpu.memory_space<vmem>>, vector<128x1xf32>,
    %c0_18 = arith.constant 0 : index
    %c0_19 = arith.constant 0 : index
    %41 = vector.load %arg6[%c0_18, %c0_19] : memref<128x1xf32, #tpu.memory_space<vmem>>, vector<128x1xf32>
    tpu.vector_store %arg6[%c0_18, %c0_19], %29 {strides = array<i32>} : memref<128x1xf32, #tpu.memory_space<vmem>>, vector<128x1xf32>,
    %c1_i32_20 = arith.constant 1 : i32
    %42 = arith.cmpi eq, %arg1, %c1_i32_20 : i32
    %43 = arith.extui %42 : i1 to i32
    %c0_i32_21 = arith.constant 0 : i32
    %44 = arith.cmpi ne, %43, %c0_i32_21 : i32
    scf.if %44 {
      %c0_22 = arith.constant 0 : index
      %c0_23 = arith.constant 0 : index
      %45 = vector.load %arg6[%c0_22, %c0_23] : memref<128x1xf32, #tpu.memory_space<vmem>>, vector<128x1xf32>
      %c0_24 = arith.constant 0 : index
      %c0_25 = arith.constant 0 : index
      %46 = vector.load %arg7[%c0_24, %c0_25] : memref<128x1xf32, #tpu.memory_space<vmem>>, vector<128x1xf32>
      %47 = math.log %46 : vector<128x1xf32>
      %48 = arith.addf %45, %47 : vector<128x1xf32>
      %c0_26 = arith.constant 0 : index
      %c0_27 = arith.constant 0 : index
      %49 = vector.load %arg4[%c0_26, %c0_27] : memref<128x1xf32, #tpu.memory_space<vmem>>, vector<128x1xf32>
      tpu.vector_store %arg4[%c0_26, %c0_27], %48 {strides = array<i32>} : memref<128x1xf32, #tpu.memory_space<vmem>>, vector<128x1xf32>,
    } else {
    }
    return
  }
  func.func @transform_0(%arg0: i32, %arg1: i32) -> (i32, i32) {
    %c0_i32 = arith.constant 0 : i32
    %c0_i32_0 = arith.constant 0 : i32
    return %arg0, %c0_i32 : i32, i32
  }
  func.func @transform_1(%arg0: i32, %arg1: i32) -> (i32, i32) {
    %c0_i32 = arith.constant 0 : i32
    %c0_i32_0 = arith.constant 0 : i32
    return %arg1, %c0_i32 : i32, i32
  }
  func.func @transform_2(%arg0: i32, %arg1: i32) -> (i32, i32) {
    %c0_i32 = arith.constant 0 : i32
    %c0_i32_0 = arith.constant 0 : i32
    return %arg0, %c0_i32 : i32, i32
  }
  func.func @transform_3(%arg0: i32, %arg1: i32) -> (i32, i32, i32) {
    %c0_i32 = arith.constant 0 : i32
    %c0_i32_0 = arith.constant 0 : i32
    return %arg0, %c0_i32, %arg1 : i32, i32, i32
  }
}

</mosaic_0001>

<llo_original>
// kernel: tpu_custom_call.1
$region0: #{tpu_custom_call.1}
  #allocation0 [shape = 'u32[]', space=smem, size = 0x4, offset = 0x4, fixed_abs, tag = 'smem constant byte address 0x4 - core index']
  #allocation1 [shape = 'u32[144,128]{1,0:T(1,128)}', space=vmem, size = 0x12000, scoped, tag = 'internal scratch']
  #allocation2 [shape = 'f32[128,1]{1,0:T(8,128)}', space=vmem, size = 0x10000, scoped, tag = 'scratch operand']
  #allocation3 [shape = 'f32[128,1]{1,0:T(8,128)}', space=vmem, size = 0x10000, scoped, tag = 'scratch operand']
  %s0 = inlined_call_operand.hbm [shape: bf16[256,128], index: 0, kind: input, shape index: {}]
  %s1 = inlined_call_operand.hbm [shape: bf16[256,128], index: 1, kind: input, shape index: {}]
  %s2 = inlined_call_operand.vmem [shape: f32[256,1], index: 2, kind: output, shape index: {0}]
  %s3 = inlined_call_operand.hbm [shape: f32[2,8,256], index: 3, kind: output, shape index: {1}]
  %4 = xla_tuple %s2, %s3
  %s5 = sld [smem:[#allocation0]]
  $region65: #{tpu_custom_call.1} parent=0
    _
  %s7 = ssub.s32 1, %s5
  %s8 = scalar_select 0, %s7, %s5
  $region1: #{tpu_custom_call.1} parent=0
    #allocation4 [shape = 'u8[65536]{0}', space=vmem, size = 0x10000, scoped, tag = 'input window, operand 0']
    #allocation5 [shape = 's32[2]{0}', space=sflag, size = 0x8, scoped, tag = 'scoped memory for tpu_custom_call.1']
    #allocation6 [shape = 's32[2]{0}', space=sflag, size = 0x8, scoped, tag = 'scoped memory for tpu_custom_call.1']
    #allocation7 [shape = 'u8[65536]{0}', space=vmem, size = 0x10000, scoped, tag = 'input window, operand 1']
    #allocation8 [shape = 's32[2]{0}', space=sflag, size = 0x8, scoped, tag = 'scoped memory for tpu_custom_call.1']
    #allocation9 [shape = 'u8[8192]{0}', space=vmem, size = 0x2000, scoped, tag = 'output window, operand 1']
    %9 = vsyncpa [#allocation5], 0
    %s10 = scalar_lea.sflag [#allocation5], 1
    %11 = vsyncpa %s10, 0
    %12 = vsyncpa [#allocation8], 0
    %s13 = scalar_lea.sflag [#allocation8], 1
    %14 = vsyncpa %s13, 0
    %15 = vsyncpa [#allocation6], 0
    %s16 = scalar_lea.sflag [#allocation6], 1
    %17 = vsyncpa %s16, 0
    loop: start=0, step=1, limit=6
    $region2: #{tpu_custom_call.1} parent=1 // loop_pre_header
      _
    $region3: #{tpu_custom_call.1} parent=1 // loop_header
      %s19 = sphi 0, %s23
      %p20 = scmp.ge.s32.totalorder %s19, 6
      %s26 = sphi 0, %s38
      %s27 = sphi 0, %s34
      %s28 = sphi 0, %s26
      %s29 = sphi 0, %s27
      %s30 = sphi 0, %s28
      %s31 = sphi 0, %s29
      %s41 = sphi 0, %s43
      %s44 = sphi 0, %s41
      %s45 = sphi 0, %s44
      %s61 = sphi 0, %s45
      %s67 = sphi 0, %s69
      %s70 = sphi 0, %s67
      %s71 = sphi 0, %s70
      %s87 = sphi 0, %s71
      %s93 = sphi 0, %s95
      %s96 = sphi 0, %s93
      %s97 = sphi 0, %s96
      %s113 = sphi 0, %s97
      %s121 = sphi 0, %s123
      %s124 = sphi 0, %s121
      %s125 = sphi 0, %s124
      %s141 = sphi 0, %s125
    $region4: #{tpu_custom_call.1} parent=1 // loop_header_branch
      %22 = sbr.rel (%p20) target = $region8
    $region5: #{tpu_custom_call.1} parent=1 // loop_body
      %s24 = ssub.s32 %s19, 1
      %s25 = ssub.s32 %s19, 2
      %s32 = sadd.s32 1, %s27
      %p33 = scmp.ge.s32.totalorder %s32, 2
      %s34 = scalar_select %p33, 0, %s32
      %s35 = sadd.s32 1, %s26
      %s36 = scalar_select %p33, %s35, %s26
      %p37 = scmp.ge.s32.totalorder %s36, 2
      %s38 = scalar_select %p37, 0, %s36
      %s39 = ssub.s32 %s26, %s38
      %p40 = scmp.eq.s32.totalorder %s39, 0
      %s42 = sadd.s32 %s41, 1
      %s43 = scalar_select %p40, %s41, %s42
      %p46 = pneg %p40
      %p47 = scmp.eq.s32.totalorder %s19, 3
      %p48 = por %p46, %p47
      %p49 = scmp.ne.s32.totalorder %s41, %s44
      %p50 = scmp.eq.s32.totalorder %s19, 0
      %p51 = por %p49, %p50
      %p52 = scmp.ne.s32.totalorder %s41, %s44
      %p53 = scmp.eq.s32.totalorder %s24, 3
      %p54 = por %p52, %p53
      %p55 = scmp.ne.s32.totalorder %s44, %s45
      %p56 = scmp.eq.s32.totalorder %s24, 0
      %p57 = por %p55, %p56
      %p58 = scmp.ne.s32.totalorder %s44, %s45
      %p59 = scmp.eq.s32.totalorder %s25, 3
      %p60 = por %p58, %p59
      %p62 = scmp.ne.s32.totalorder %s45, %s61
      %p63 = scmp.eq.s32.totalorder %s25, 0
      %p64 = por %p62, %p63
      %s65 = ssub.s32 %s27, %s34
      %p66 = scmp.eq.s32.totalorder %s65, 0
      %s68 = sadd.s32 %s67, 1
      %s69 = scalar_select %p66, %s67, %s68
      %p72 = pneg %p66
      %p73 = scmp.eq.s32.totalorder %s19, 3
      %p74 = por %p72, %p73
      %p75 = scmp.ne.s32.totalorder %s67, %s70
      %p76 = scmp.eq.s32.totalorder %s19, 0
      %p77 = por %p75, %p76
      %p78 = scmp.ne.s32.totalorder %s67, %s70
      %p79 = scmp.eq.s32.totalorder %s24, 3
      %p80 = por %p78, %p79
      %p81 = scmp.ne.s32.totalorder %s70, %s71
      %p82 = scmp.eq.s32.totalorder %s24, 0
      %p83 = por %p81, %p82
      %p84 = scmp.ne.s32.totalorder %s70, %s71
      %p85 = scmp.eq.s32.totalorder %s25, 3
      %p86 = por %p84, %p85
      %p88 = scmp.ne.s32.totalorder %s71, %s87
      %p89 = scmp.eq.s32.totalorder %s25, 0
      %p90 = por %p88, %p89
      %s91 = ssub.s32 %s26, %s38
      %p92 = scmp.eq.s32.totalorder %s91, 0
      %s94 = sadd.s32 %s93, 1
      %s95 = scalar_select %p92, %s93, %s94
      %p98 = pneg %p92
      %p99 = scmp.eq.s32.totalorder %s19, 3
      %p100 = por %p98, %p99
      %p101 = scmp.ne.s32.totalorder %s93, %s96
      %p102 = scmp.eq.s32.totalorder %s19, 0
      %p103 = por %p101, %p102
      %p104 = scmp.ne.s32.totalorder %s93, %s96
      %p105 = scmp.eq.s32.totalorder %s24, 3
      %p106 = por %p104, %p105
      %p107 = scmp.ne.s32.totalorder %s96, %s97
      %p108 = scmp.eq.s32.totalorder %s24, 0
      %p109 = por %p107, %p108
      %p110 = scmp.ne.s32.totalorder %s96, %s97
      %p111 = scmp.eq.s32.totalorder %s25, 3
      %p112 = por %p110, %p111
      %p114 = scmp.ne.s32.totalorder %s97, %s113
      %p115 = scmp.eq.s32.totalorder %s25, 0
      %p116 = por %p114, %p115
      %s117 = ssub.s32 %s26, %s38
      %s118 = ssub.s32 %s27, %s34
      %s119 = sor.u32 %s117, %s118
      %p120 = scmp.eq.s32.totalorder %s119, 0
      %s122 = sadd.s32 %s121, 1
      %s123 = scalar_select %p120, %s121, %s122
      %p126 = pneg %p120
      %p127 = scmp.eq.s32.totalorder %s19, 3
      %p128 = por %p126, %p127
      %p129 = scmp.ne.s32.totalorder %s121, %s124
      %p130 = scmp.eq.s32.totalorder %s19, 0
      %p131 = por %p129, %p130
      %p132 = scmp.ne.s32.totalorder %s121, %s124
      %p133 = scmp.eq.s32.totalorder %s24, 3
      %p134 = por %p132, %p133
      %p135 = scmp.ne.s32.totalorder %s124, %s125
      %p136 = scmp.eq.s32.totalorder %s24, 0
      %p137 = por %p135, %p136
      %p138 = scmp.ne.s32.totalorder %s124, %s125
      %p139 = scmp.eq.s32.totalorder %s25, 3
      %p140 = por %p138, %p139
      %p142 = scmp.ne.s32.totalorder %s125, %s141
      %p143 = scmp.eq.s32.totalorder %s25, 0
      %p144 = por %p142, %p143
      %p145 = scmp.le.s32.totalorder 1, %s19
      %p146 = scmp.lt.s32.totalorder %s19, 5
      %p147 = pnand %p145, %p146
      %p148 = pneg %p147
      // Predicated region
      $region9: #{tpu_custom_call.1} parent=5 // pred_check
        _
      $region10: #{tpu_custom_call.1} parent=5 // pred_check_branch
        %150 = sbr.rel (%p147) target = $region12
      $region11: #{tpu_custom_call.1} parent=5 // pred_region
        %s151 = ssub.s32 %s19, 1
      $region12: #{tpu_custom_call.1} parent=5 // pred_fallthru
        _
      %p152 = scmp.lt.s32.totalorder %s19, 4
      // Predicated region
      $region13: #{tpu_custom_call.1} parent=5 // pred_check
        %p153 = pneg %p152
      $region14: #{tpu_custom_call.1} parent=5 // pred_check_branch
        %155 = sbr.rel (%p153) target = $region16
      $region15: #{tpu_custom_call.1} parent=5 // pred_region
        // Predicated region
        $region17: #{tpu_custom_call.1} parent=15 // pred_check
          %p156 = pneg %p51
        $region18: #{tpu_custom_call.1} parent=15 // pred_check_branch
          %158 = sbr.rel (%p156) target = $region20
        $region19: #{tpu_custom_call.1} parent=15 // pred_region
          %s159 = sand.u32 %s41, 1
          %s160 = scalar_lea.sflag [#allocation5], %s159
          %s161 = sand.u32 %s41, 1
          %s162 = smul.addr %s161, 64
          %s163 = scalar_lea.vmem [#allocation4], %s162
          %s164 = smul.u32 16, %s26
          %s166 = ssub.s32 1024, 1024
          %167 = vsyncadd %s160, %s166
          %s168 = smul.addr %s164, 64
          %s169 = scalar_lea.hbm %s0, %s168
          %s170 = sshll.u32 %s163, 4
          %s171 = int_to_ptr.vmem [resolvable:$true] %s170
          %176 = dma.hbm_to_vmem [thread:$0]  %s169, 1024, %s171, %s160, 64, 64, 4
        $region20: #{tpu_custom_call.1} parent=15 // pred_fallthru
          _
        // Predicated region
        $region21: #{tpu_custom_call.1} parent=15 // pred_check
          %p177 = pneg %p77
        $region22: #{tpu_custom_call.1} parent=15 // pred_check_branch
          %179 = sbr.rel (%p177) target = $region24
        $region23: #{tpu_custom_call.1} parent=15 // pred_region
          %s180 = sand.u32 %s67, 1
          %s181 = scalar_lea.sflag [#allocation8], %s180
          %s182 = sand.u32 %s67, 1
          %s183 = smul.addr %s182, 64
          %s184 = scalar_lea.vmem [#allocation7], %s183
          %s185 = smul.u32 16, %s27
          %s187 = ssub.s32 1024, 1024
          %188 = vsyncadd %s181, %s187
          %s189 = smul.addr %s185, 64
          %s190 = scalar_lea.hbm %s1, %s189
          %s191 = sshll.u32 %s184, 4
          %s192 = int_to_ptr.vmem [resolvable:$true] %s191
          %197 = dma.hbm_to_vmem [thread:$0]  %s190, 1024, %s192, %s181, 64, 64, 4
        $region24: #{tpu_custom_call.1} parent=15 // pred_fallthru
          _
      $region16: #{tpu_custom_call.1} parent=5 // pred_fallthru
        _
      %p198 = scmp.le.s32.totalorder 1, %s19
      %p199 = scmp.lt.s32.totalorder %s19, 5
      %p200 = pnand %p198, %p199
      %p201 = pneg %p200
      // Predicated region
      $region25: #{tpu_custom_call.1} parent=5 // pred_check
        _
      $region26: #{tpu_custom_call.1} parent=5 // pred_check_branch
        %203 = sbr.rel (%p200) target = $region28
      $region27: #{tpu_custom_call.1} parent=5 // pred_region
        %s204 = ssub.s32 %s19, 1
        %s205 = sand.u32 %s44, 1
        %s206 = scalar_lea.sflag [#allocation5], %s205
        %s207 = sand.u32 %s44, 1
        %s208 = smul.addr %s207, 64
        %s209 = scalar_lea.vmem [#allocation4], %s208
        // Predicated region
        $region29: #{tpu_custom_call.1} parent=27 // pred_check
          %p210 = pneg %p57
        $region30: #{tpu_custom_call.1} parent=27 // pred_check_branch
          %212 = sbr.rel (%p210) target = $region32
        $region31: #{tpu_custom_call.1} parent=27 // pred_region
          %213 = dma.done %s206, 1024
        $region32: #{tpu_custom_call.1} parent=27 // pred_fallthru
          _
        %s214 = sand.u32 %s70, 1
        %s215 = scalar_lea.sflag [#allocation8], %s214
        %s216 = sand.u32 %s70, 1
        %s217 = smul.addr %s216, 64
        %s218 = scalar_lea.vmem [#allocation7], %s217
        // Predicated region
        $region33: #{tpu_custom_call.1} parent=27 // pred_check
          %p219 = pneg %p83
        $region34: #{tpu_custom_call.1} parent=27 // pred_check_branch
          %221 = sbr.rel (%p219) target = $region36
        $region35: #{tpu_custom_call.1} parent=27 // pred_region
          %222 = dma.done %s215, 1024
        $region36: #{tpu_custom_call.1} parent=27 // pred_fallthru
          _
        %s223 = sand.u32 %s44, 1
        %s224 = scalar_lea.sflag [#allocation5], %s223
        %s225 = sand.u32 %s44, 1
        %s226 = smul.addr %s225, 64
        %s227 = scalar_lea.vmem [#allocation4], %s226
        %p228 = pneg %p57
        %p229 = pneg %p54
        %s230 = sand.u32 %s70, 1
        %s231 = scalar_lea.sflag [#allocation8], %s230
        %s232 = sand.u32 %s70, 1
        %s233 = smul.addr %s232, 64
        %s234 = scalar_lea.vmem [#allocation7], %s233
        %p235 = pneg %p83
        %p236 = pneg %p80
        %p237 = pneg %p109
        %p238 = pneg %p106
        %s239 = smul.u32 16, %s28
        %p240 = scmp.lt.s32.totalorder %s239, 31
        %s241 = scalar_select %p240, %s239, 31
        %s242 = smul.addr %s241, 8
        %s243 = scalar_lea.vmem %s2, %s242
        %p244 = pneg %p137
        %p245 = pneg %p134
        %s246 = sand.u32 %s124, 1
        %s247 = scalar_lea.sflag [#allocation6], %s246
        %s248 = sand.u32 %s124, 1
        %s249 = smul.addr %s248, 8
        %s250 = scalar_lea.vmem [#allocation9], %s249
        %s251 = smul.u32 16, %s28
        %s252 = smul.u32 16, %s29
        %s253 = smul.u32 16, %s28
        %p254 = scmp.lt.s32.totalorder %s253, 31
        %s255 = scalar_select %p254, %s253, 31
        %s256 = smul.addr %s255, 8
        %s257 = scalar_lea.vmem %s2, %s256
        %s258 = smul.u32 16, %s28
        %v260 = vld [vmem:[%s209] sm:$0xf]
        %v261 = vld [vmem:[%s209 + $0x4] sm:$0xf]
        %v262 = vld [vmem:[%s209 + $0x8] sm:$0xf]
        %v263 = vld [vmem:[%s209 + $0xc] sm:$0xf]
        %v264 = vld [vmem:[%s209 + $0x10] sm:$0xf]
        %v265 = vld [vmem:[%s209 + $0x14] sm:$0xf]
        %v266 = vld [vmem:[%s209 + $0x18] sm:$0xf]
        %v267 = vld [vmem:[%s209 + $0x1c] sm:$0xf]
        %v268 = vld [vmem:[%s209 + $0x20] sm:$0xf]
        %v269 = vld [vmem:[%s209 + $0x24] sm:$0xf]
        %v270 = vld [vmem:[%s209 + $0x28] sm:$0xf]
        %v271 = vld [vmem:[%s209 + $0x2c] sm:$0xf]
        %v272 = vld [vmem:[%s209 + $0x30] sm:$0xf]
        %v273 = vld [vmem:[%s209 + $0x34] sm:$0xf]
        %v274 = vld [vmem:[%s209 + $0x38] sm:$0xf]
        %v275 = vld [vmem:[%s209 + $0x3c] sm:$0xf]
        %v276 = vld [vmem:[%s218] sm:$0xf]
        %v277 = vld [vmem:[%s218 + $0x4] sm:$0xf]
        %v278 = vld [vmem:[%s218 + $0x8] sm:$0xf]
        %v279 = vld [vmem:[%s218 + $0xc] sm:$0xf]
        %v280 = vld [vmem:[%s218 + $0x10] sm:$0xf]
        %v281 = vld [vmem:[%s218 + $0x14] sm:$0xf]
        %v282 = vld [vmem:[%s218 + $0x18] sm:$0xf]
        %v283 = vld [vmem:[%s218 + $0x1c] sm:$0xf]
        %v284 = vld [vmem:[%s218 + $0x20] sm:$0xf]
        %v285 = vld [vmem:[%s218 + $0x24] sm:$0xf]
        %v286 = vld [vmem:[%s218 + $0x28] sm:$0xf]
        %v287 = vld [vmem:[%s218 + $0x2c] sm:$0xf]
        %v288 = vld [vmem:[%s218 + $0x30] sm:$0xf]
        %v289 = vld [vmem:[%s218 + $0x34] sm:$0xf]
        %v290 = vld [vmem:[%s218 + $0x38] sm:$0xf]
        %v291 = vld [vmem:[%s218 + $0x3c] sm:$0xf]
        %v308 = vunpack.c.l.b16 %v260
        %v309 = vunpack.c.l.b16 %v261
        %v310 = vunpack.c.l.b16 %v262
        %v311 = vunpack.c.l.b16 %v263
        %v312 = vunpack.c.l.b16 %v264
        %v313 = vunpack.c.l.b16 %v265
        %v314 = vunpack.c.l.b16 %v266
        %v315 = vunpack.c.l.b16 %v267
        %v316 = vunpack.c.l.b16 %v268
        %v317 = vunpack.c.l.b16 %v269
        %v318 = vunpack.c.l.b16 %v270
        %v319 = vunpack.c.l.b16 %v271
        %v320 = vunpack.c.l.b16 %v272
        %v321 = vunpack.c.l.b16 %v273
        %v322 = vunpack.c.l.b16 %v274
        %v323 = vunpack.c.l.b16 %v275
        %v324 = vpack.c.b16 %v309, %v308
        %v325 = vpack.c.b16 %v311, %v310
        %v326 = vpack.c.b16 %v313, %v312
        %v327 = vpack.c.b16 %v315, %v314
        %v328 = vpack.c.b16 %v317, %v316
        %v329 = vpack.c.b16 %v319, %v318
        %v330 = vpack.c.b16 %v321, %v320
        %v331 = vpack.c.b16 %v323, %v322
        %v356 = vunpack.c.l.b16 %v276
        %v357 = vunpack.c.l.b16 %v277
        %v358 = vunpack.c.l.b16 %v278
        %v359 = vunpack.c.l.b16 %v279
        %v360 = vunpack.c.l.b16 %v280
        %v361 = vunpack.c.l.b16 %v281
        %v362 = vunpack.c.l.b16 %v282
        %v363 = vunpack.c.l.b16 %v283
        %v364 = vunpack.c.l.b16 %v284
        %v365 = vunpack.c.l.b16 %v285
        %v366 = vunpack.c.l.b16 %v286
        %v367 = vunpack.c.l.b16 %v287
        %v368 = vunpack.c.l.b16 %v288
        %v369 = vunpack.c.l.b16 %v289
        %v370 = vunpack.c.l.b16 %v290
        %v371 = vunpack.c.l.b16 %v291
        %v372 = vpack.c.b16 %v357, %v356
        %v373 = vpack.c.b16 %v359, %v358
        %v374 = vpack.c.b16 %v361, %v360
        %v375 = vpack.c.b16 %v363, %v362
        %v376 = vpack.c.b16 %v365, %v364
        %v377 = vpack.c.b16 %v367, %v366
        %v378 = vpack.c.b16 %v369, %v368
        %v379 = vpack.c.b16 %v371, %v370
        %388 = vmatprep.subr.bf16.mxu0 0
        %389 = vmatpush1.bf16.xpose.msra.mxu0 %v379
        %390 = vmatprep.subr.bf16.mxu0 0
        %391 = vmatpush1.bf16.xpose.msra.mxu0 %v378
        %392 = vmatprep.subr.bf16.mxu0 0
        %393 = vmatpush1.bf16.xpose.msra.mxu0 %v377
        %394 = vmatprep.subr.bf16.mxu0 0
        %395 = vmatpush1.bf16.xpose.msra.mxu0 %v376
        %396 = vmatprep.subr.bf16.mxu0 0
        %397 = vmatpush1.bf16.xpose.msra.mxu0 %v375
        %398 = vmatprep.subr.bf16.mxu0 0
        %399 = vmatpush1.bf16.xpose.msra.mxu0 %v374
        %400 = vmatprep.subr.bf16.mxu0 0
        %401 = vmatpush1.bf16.xpose.msra.mxu0 %v373
        %402 = vmatprep.subr.bf16.mxu0 0
        %403 = vmatpush1.bf16.xpose.msra.mxu0 %v372
        %404 = vmatprep.subr.bf16.mxu0 0
        %405 = vmatpush2.bf16.xpose.msra.mxu0 0
        %406 = vmatprep.subr.bf16.mxu0 0
        %407 = vmatpush2.bf16.xpose.msra.mxu0 0
        %408 = vmatprep.subr.bf16.mxu0 0
        %409 = vmatpush2.bf16.xpose.msra.mxu0 0
        %410 = vmatprep.subr.bf16.mxu0 0
        %411 = vmatpush2.bf16.xpose.msra.mxu0 0
        %412 = vmatprep.subr.bf16.mxu0 0
        %413 = vmatpush2.bf16.xpose.msra.mxu0 0
        %414 = vmatprep.subr.bf16.mxu0 0
        %415 = vmatpush2.bf16.xpose.msra.mxu0 0
        %416 = vmatprep.subr.bf16.mxu0 0
        %417 = vmatpush2.bf16.xpose.msra.mxu0 0
        %418 = vmatprep.subr.bf16.mxu0 0
        %419 = vmatpush2.bf16.xpose.msra.mxu0 0
        %420 = vmatprep.mubr.bf16.mxu0 0
        %421 = vmatmul.mubr.bf16.gmra.mxu0 %v324
        %v422 = vpop.f32.mrf.mxu0
        %v423 = vadd.f32 0.0, %v422
        %v424 = vpop.f32.mrf.mxu0
        %v425 = vpop.f32.mrf.mxu0
        %v426 = vadd.f32 0.0, %v425
        %v427 = vpop.f32.mrf.mxu0
        %428 = vmatprep.mubr.bf16.mxu0 0
        %429 = vmatmul.mubr.bf16.gmra.mxu0 %v325
        %v430 = vpop.f32.mrf.mxu0
        %v431 = vadd.f32 0.0, %v430
        %v432 = vpop.f32.mrf.mxu0
        %v433 = vpop.f32.mrf.mxu0
        %v434 = vadd.f32 0.0, %v433
        %v435 = vpop.f32.mrf.mxu0
        %436 = vmatprep.mubr.bf16.mxu0 0
        %437 = vmatmul.mubr.bf16.gmra.mxu0 %v326
        %v438 = vpop.f32.mrf.mxu0
        %v439 = vadd.f32 0.0, %v438
        %v440 = vpop.f32.mrf.mxu0
        %v441 = vpop.f32.mrf.mxu0
        %v442 = vadd.f32 0.0, %v441
        %v443 = vpop.f32.mrf.mxu0
        %444 = vmatprep.mubr.bf16.mxu0 0
        %445 = vmatmul.mubr.bf16.gmra.mxu0 %v327
        %v446 = vpop.f32.mrf.mxu0
        %v447 = vadd.f32 0.0, %v446
        %v448 = vpop.f32.mrf.mxu0
        %v449 = vpop.f32.mrf.mxu0
        %v450 = vadd.f32 0.0, %v449
        %v451 = vpop.f32.mrf.mxu0
        %452 = vmatprep.mubr.bf16.mxu0 0
        %453 = vmatmul.mubr.bf16.gmra.mxu0 %v328
        %v454 = vpop.f32.mrf.mxu0
        %v455 = vadd.f32 0.0, %v454
        %v456 = vpop.f32.mrf.mxu0
        %v457 = vpop.f32.mrf.mxu0
        %v458 = vadd.f32 0.0, %v457
        %v459 = vpop.f32.mrf.mxu0
        %460 = vmatprep.mubr.bf16.mxu0 0
        %461 = vmatmul.mubr.bf16.gmra.mxu0 %v329
        %v462 = vpop.f32.mrf.mxu0
        %v463 = vadd.f32 0.0, %v462
        %v464 = vpop.f32.mrf.mxu0
        %v465 = vpop.f32.mrf.mxu0
        %v466 = vadd.f32 0.0, %v465
        %v467 = vpop.f32.mrf.mxu0
        %468 = vmatprep.mubr.bf16.mxu0 0
        %469 = vmatmul.mubr.bf16.gmra.mxu0 %v330
        %v470 = vpop.f32.mrf.mxu0
        %v471 = vadd.f32 0.0, %v470
        %v472 = vpop.f32.mrf.mxu0
        %v473 = vpop.f32.mrf.mxu0
        %v474 = vadd.f32 0.0, %v473
        %v475 = vpop.f32.mrf.mxu0
        %476 = vmatprep.mubr.bf16.mxu0 0
        %477 = vmatmul.mubr.bf16.gmra.mxu0 %v331
        %v478 = vpop.f32.mrf.mxu0
        %v479 = vadd.f32 0.0, %v478
        %v480 = vpop.f32.mrf.mxu0
        %v481 = vpop.f32.mrf.mxu0
        %v482 = vadd.f32 0.0, %v481
        %v483 = vpop.f32.mrf.mxu0
        %484 = vdwg.mxu0
        %v485 = vmul.f32 %v423, 14.285714
        %v486 = vmul.f32 %v426, 14.285714
        %v487 = vmul.f32 %v431, 14.285714
        %v488 = vmul.f32 %v434, 14.285714
        %v489 = vmul.f32 %v439, 14.285714
        %v490 = vmul.f32 %v442, 14.285714
        %v491 = vmul.f32 %v447, 14.285714
        %v492 = vmul.f32 %v450, 14.285714
        %v493 = vmul.f32 %v455, 14.285714
        %v494 = vmul.f32 %v458, 14.285714
        %v495 = vmul.f32 %v463, 14.285714
        %v496 = vmul.f32 %v466, 14.285714
        %v497 = vmul.f32 %v471, 14.285714
        %v498 = vmul.f32 %v474, 14.285714
        %v499 = vmul.f32 %v479, 14.285714
        %v500 = vmul.f32 %v482, 14.285714
        %v501 = vmax.f32 %v485, %v489
        %v502 = vmax.f32 %v486, %v490
        %v503 = vmax.f32 %v487, %v491
        %v504 = vmax.f32 %v488, %v492
        %v505 = vmax.f32 %v501, %v493
        %v506 = vmax.f32 %v502, %v494
        %v507 = vmax.f32 %v503, %v495
        %v508 = vmax.f32 %v504, %v496
        %v509 = vmax.f32 %v505, %v497
        %v510 = vmax.f32 %v506, %v498
        %v511 = vmax.f32 %v507, %v499
        %v512 = vmax.f32 %v508, %v500
        %v513 = vmax.f32 %v509, %v510
        %v514 = vmax.f32 %v511, %v512
        %v515 = vmax.f32 %v513, %v514
        %v516 = vrot.slane %v515, 4
        %v517 = vmax.f32 %v515, %v516
        %v518 = vrot.slane %v517, 2
        %v519 = vmax.f32 %v517, %v518
        %v520 = vrot.slane %v519, 1
        %v521 = vmax.f32 %v519, %v520
        %v522 = vsub.f32 %v485, %v521
        %v523 = vsub.f32 %v486, %v521
        %v524 = vsub.f32 %v487, %v521
        %v525 = vsub.f32 %v488, %v521
        %v526 = vsub.f32 %v489, %v521
        %v527 = vsub.f32 %v490, %v521
        %v528 = vsub.f32 %v491, %v521
        %v529 = vsub.f32 %v492, %v521
        %v530 = vsub.f32 %v493, %v521
        %v531 = vsub.f32 %v494, %v521
        %v532 = vsub.f32 %v495, %v521
        %v533 = vsub.f32 %v496, %v521
        %v534 = vsub.f32 %v497, %v521
        %v535 = vsub.f32 %v498, %v521
        %v536 = vsub.f32 %v499, %v521
        %v537 = vsub.f32 %v500, %v521
        %v538 = vmul.f32 %v522, 1.442695
        %v539 = vpow.pop %v538
        %v540 = vmul.f32 %v523, 1.442695
        %v541 = vpow.pop %v540
        %v542 = vmul.f32 %v524, 1.442695
        %v543 = vpow.pop %v542
        %v544 = vmul.f32 %v525, 1.442695
        %v545 = vpow.pop %v544
        %v546 = vmul.f32 %v526, 1.442695
        %v547 = vpow.pop %v546
        %v548 = vmul.f32 %v527, 1.442695
        %v549 = vpow.pop %v548
        %v550 = vmul.f32 %v528, 1.442695
        %v551 = vpow.pop %v550
        %v552 = vmul.f32 %v529, 1.442695
        %v553 = vpow.pop %v552
        %v554 = vmul.f32 %v530, 1.442695
        %v555 = vpow.pop %v554
        %v556 = vmul.f32 %v531, 1.442695
        %v557 = vpow.pop %v556
        %v558 = vmul.f32 %v532, 1.442695
        %v559 = vpow.pop %v558
        %v560 = vmul.f32 %v533, 1.442695
        %v561 = vpow.pop %v560
        %v562 = vmul.f32 %v534, 1.442695
        %v563 = vpow.pop %v562
        %v564 = vmul.f32 %v535, 1.442695
        %v565 = vpow.pop %v564
        %v566 = vmul.f32 %v536, 1.442695
        %v567 = vpow.pop %v566
        %v568 = vmul.f32 %v537, 1.442695
        %v569 = vpow.pop %v568
        %v570 = vadd.f32 %v539, %v541
        %v571 = vadd.f32 %v570, %v543
        %v572 = vadd.f32 %v571, %v545
        %v573 = vadd.f32 %v572, %v547
        %v574 = vadd.f32 %v573, %v549
        %v575 = vadd.f32 %v574, %v551
        %v576 = vadd.f32 %v575, %v553
        %v577 = vadd.f32 %v576, %v555
        %v578 = vadd.f32 %v577, %v557
        %v579 = vadd.f32 %v578, %v559
        %v580 = vadd.f32 %v579, %v561
        %v581 = vadd.f32 %v580, %v563
        %v582 = vadd.f32 %v581, %v565
        %v583 = vadd.f32 %v582, %v567
        %v584 = vadd.f32 %v583, %v569
        %v585 = vrot.slane %v584, 4
        %v586 = vadd.f32 %v584, %v585
        %v587 = vrot.slane %v586, 2
        %v588 = vadd.f32 %v586, %v587
        %v589 = vrot.slane %v588, 1
        %v590 = vadd.f32 %v588, %v589
        %v591 = vlaneseq
        %v592 = vshrl.u32 %v591, 7
        %vm593 = vcmp.lt.s32.totalorder %v592, 1
        %v594 = vsel %vm593, %v521, %v590
        %595 = vst [vmem:[%s250] sm:$0xff] %v594
        %p596 = scmp.eq.s32.totalorder %s29, 0
        // Predicated region
        $region37: #{tpu_custom_call.1} parent=27 // pred_check
          %p597 = pneg %p596
        $region38: #{tpu_custom_call.1} parent=27 // pred_check_branch
          %599 = sbr.rel (%p597) target = $region40
        $region39: #{tpu_custom_call.1} parent=27 // pred_region
          %vm600 = vcmask 7168
          %601 = vst.msk [vmem:[#allocation2] sm:$0xff] %vm600, -inf
          %602 = vst.msk [vmem:[#allocation2 + $0x8] sm:$0xff] %vm600, -inf
          %603 = vst.msk [vmem:[#allocation2 + $0x10] sm:$0xff] %vm600, -inf
          %604 = vst.msk [vmem:[#allocation2 + $0x18] sm:$0xff] %vm600, -inf
          %605 = vst.msk [vmem:[#allocation2 + $0x20] sm:$0xff] %vm600, -inf
          %606 = vst.msk [vmem:[#allocation2 + $0x28] sm:$0xff] %vm600, -inf
          %607 = vst.msk [vmem:[#allocation2 + $0x30] sm:$0xff] %vm600, -inf
          %608 = vst.msk [vmem:[#allocation2 + $0x38] sm:$0xff] %vm600, -inf
          %609 = vst.msk [vmem:[#allocation2 + $0x40] sm:$0xff] %vm600, -inf
          %610 = vst.msk [vmem:[#allocation2 + $0x48] sm:$0xff] %vm600, -inf
          %611 = vst.msk [vmem:[#allocation2 + $0x50] sm:$0xff] %vm600, -inf
          %612 = vst.msk [vmem:[#allocation2 + $0x58] sm:$0xff] %vm600, -inf
          %613 = vst.msk [vmem:[#allocation2 + $0x60] sm:$0xff] %vm600, -inf
          %614 = vst.msk [vmem:[#allocation2 + $0x68] sm:$0xff] %vm600, -inf
          %615 = vst.msk [vmem:[#allocation2 + $0x70] sm:$0xff] %vm600, -inf
          %616 = vst.msk [vmem:[#allocation2 + $0x78] sm:$0xff] %vm600, -inf
          %617 = vst.msk [vmem:[#allocation3] sm:$0xff] %vm600, 0.0
          %618 = vst.msk [vmem:[#allocation3 + $0x8] sm:$0xff] %vm600, 0.0
          %619 = vst.msk [vmem:[#allocation3 + $0x10] sm:$0xff] %vm600, 0.0
          %620 = vst.msk [vmem:[#allocation3 + $0x18] sm:$0xff] %vm600, 0.0
          %621 = vst.msk [vmem:[#allocation3 + $0x20] sm:$0xff] %vm600, 0.0
          %622 = vst.msk [vmem:[#allocation3 + $0x28] sm:$0xff] %vm600, 0.0
          %623 = vst.msk [vmem:[#allocation3 + $0x30] sm:$0xff] %vm600, 0.0
          %624 = vst.msk [vmem:[#allocation3 + $0x38] sm:$0xff] %vm600, 0.0
          %625 = vst.msk [vmem:[#allocation3 + $0x40] sm:$0xff] %vm600, 0.0
          %626 = vst.msk [vmem:[#allocation3 + $0x48] sm:$0xff] %vm600, 0.0
          %627 = vst.msk [vmem:[#allocation3 + $0x50] sm:$0xff] %vm600, 0.0
          %628 = vst.msk [vmem:[#allocation3 + $0x58] sm:$0xff] %vm600, 0.0
          %629 = vst.msk [vmem:[#allocation3 + $0x60] sm:$0xff] %vm600, 0.0
          %630 = vst.msk [vmem:[#allocation3 + $0x68] sm:$0xff] %vm600, 0.0
          %631 = vst.msk [vmem:[#allocation3 + $0x70] sm:$0xff] %vm600, 0.0
          %632 = vst.msk [vmem:[#allocation3 + $0x78] sm:$0xff] %vm600, 0.0
        $region40: #{tpu_custom_call.1} parent=27 // pred_fallthru
          _
        %v633 = vld [vmem:[#allocation2] sm:$0xff]
        %v634 = vld [vmem:[#allocation2 + $0x8] sm:$0xff]
        %v635 = vld [vmem:[#allocation2 + $0x10] sm:$0xff]
        %v636 = vld [vmem:[#allocation2 + $0x18] sm:$0xff]
        %v637 = vld [vmem:[#allocation2 + $0x20] sm:$0xff]
        %v638 = vld [vmem:[#allocation2 + $0x28] sm:$0xff]
        %v639 = vld [vmem:[#allocation2 + $0x30] sm:$0xff]
        %v640 = vld [vmem:[#allocation2 + $0x38] sm:$0xff]
        %v641 = vld [vmem:[#allocation2 + $0x40] sm:$0xff]
        %v642 = vld [vmem:[#allocation2 + $0x48] sm:$0xff]
        %v643 = vld [vmem:[#allocation2 + $0x50] sm:$0xff]
        %v644 = vld [vmem:[#allocation2 + $0x58] sm:$0xff]
        %v645 = vld [vmem:[#allocation2 + $0x60] sm:$0xff]
        %v646 = vld [vmem:[#allocation2 + $0x68] sm:$0xff]
        %v647 = vld [vmem:[#allocation2 + $0x70] sm:$0xff]
        %v648 = vld [vmem:[#allocation2 + $0x78] sm:$0xff]
        %649 = vmax.xlane.f32.xlu0 %v485
        %v650 = vpop.xlane.xlu0 %649
        %651 = vmax.xlane.f32.xlu0 %v486
        %v652 = vpop.xlane.xlu0 %651
        %653 = vmax.xlane.f32.xlu0 %v487
        %v654 = vpop.xlane.xlu0 %653
        %655 = vmax.xlane.f32.xlu0 %v488
        %v656 = vpop.xlane.xlu0 %655
        %657 = vmax.xlane.f32.xlu0 %v489
        %v658 = vpop.xlane.xlu0 %657
        %659 = vmax.xlane.f32.xlu0 %v490
        %v660 = vpop.xlane.xlu0 %659
        %661 = vmax.xlane.f32.xlu0 %v491
        %v662 = vpop.xlane.xlu0 %661
        %663 = vmax.xlane.f32.xlu0 %v492
        %v664 = vpop.xlane.xlu0 %663
        %665 = vmax.xlane.f32.xlu0 %v493
        %v666 = vpop.xlane.xlu0 %665
        %667 = vmax.xlane.f32.xlu0 %v494
        %v668 = vpop.xlane.xlu0 %667
        %669 = vmax.xlane.f32.xlu0 %v495
        %v670 = vpop.xlane.xlu0 %669
        %671 = vmax.xlane.f32.xlu0 %v496
        %v672 = vpop.xlane.xlu0 %671
        %673 = vmax.xlane.f32.xlu0 %v497
        %v674 = vpop.xlane.xlu0 %673
        %675 = vmax.xlane.f32.xlu0 %v498
        %v676 = vpop.xlane.xlu0 %675
        %677 = vmax.xlane.f32.xlu0 %v499
        %v678 = vpop.xlane.xlu0 %677
        %679 = vmax.xlane.f32.xlu0 %v500
        %v680 = vpop.xlane.xlu0 %679
        %v681 = vmax.f32 %v633, %v650
        %v682 = vmax.f32 %v634, %v652
        %v683 = vmax.f32 %v635, %v654
        %v684 = vmax.f32 %v636, %v656
        %v685 = vmax.f32 %v637, %v658
        %v686 = vmax.f32 %v638, %v660
        %v687 = vmax.f32 %v639, %v662
        %v688 = vmax.f32 %v640, %v664
        %v689 = vmax.f32 %v641, %v666
        %v690 = vmax.f32 %v642, %v668
        %v691 = vmax.f32 %v643, %v670
        %v692 = vmax.f32 %v644, %v672
        %v693 = vmax.f32 %v645, %v674
        %v694 = vmax.f32 %v646, %v676
        %v695 = vmax.f32 %v647, %v678
        %v696 = vmax.f32 %v648, %v680
        %v697 = vsub.f32 %v633, %v681
        %v698 = vsub.f32 %v634, %v682
        %v699 = vsub.f32 %v635, %v683
        %v700 = vsub.f32 %v636, %v684
        %v701 = vsub.f32 %v637, %v685
        %v702 = vsub.f32 %v638, %v686
        %v703 = vsub.f32 %v639, %v687
        %v704 = vsub.f32 %v640, %v688
        %v705 = vsub.f32 %v641, %v689
        %v706 = vsub.f32 %v642, %v690
        %v707 = vsub.f32 %v643, %v691
        %v708 = vsub.f32 %v644, %v692
        %v709 = vsub.f32 %v645, %v693
        %v710 = vsub.f32 %v646, %v694
        %v711 = vsub.f32 %v647, %v695
        %v712 = vsub.f32 %v648, %v696
        %v713 = vmul.f32 %v697, 1.442695
        %v714 = vpow.pop %v713
        %v715 = vmul.f32 %v698, 1.442695
        %v716 = vpow.pop %v715
        %v717 = vmul.f32 %v699, 1.442695
        %v718 = vpow.pop %v717
        %v719 = vmul.f32 %v700, 1.442695
        %v720 = vpow.pop %v719
        %v721 = vmul.f32 %v701, 1.442695
        %v722 = vpow.pop %v721
        %v723 = vmul.f32 %v702, 1.442695
        %v724 = vpow.pop %v723
        %v725 = vmul.f32 %v703, 1.442695
        %v726 = vpow.pop %v725
        %v727 = vmul.f32 %v704, 1.442695
        %v728 = vpow.pop %v727
        %v729 = vmul.f32 %v705, 1.442695
        %v730 = vpow.pop %v729
        %v731 = vmul.f32 %v706, 1.442695
        %v732 = vpow.pop %v731
        %v733 = vmul.f32 %v707, 1.442695
        %v734 = vpow.pop %v733
        %v735 = vmul.f32 %v708, 1.442695
        %v736 = vpow.pop %v735
        %v737 = vmul.f32 %v709, 1.442695
        %v738 = vpow.pop %v737
        %v739 = vmul.f32 %v710, 1.442695
        %v740 = vpow.pop %v739
        %v741 = vmul.f32 %v711, 1.442695
        %v742 = vpow.pop %v741
        %v743 = vmul.f32 %v712, 1.442695
        %v744 = vpow.pop %v743
        %746 = vset.pattern.permute.xlu0 0
        %747 = vperm.xlu0 %746, %v681
        %v748 = vpop.permute.xlu0 %747
        %751 = vset.pattern.permute.xlu0 0
        %752 = vperm.xlu0 %751, %v682
        %v753 = vpop.permute.xlu0 %752
        %756 = vset.pattern.permute.xlu0 0
        %757 = vperm.xlu0 %756, %v683
        %v758 = vpop.permute.xlu0 %757
        %761 = vset.pattern.permute.xlu0 0
        %762 = vperm.xlu0 %761, %v684
        %v763 = vpop.permute.xlu0 %762
        %766 = vset.pattern.permute.xlu0 0
        %767 = vperm.xlu0 %766, %v685
        %v768 = vpop.permute.xlu0 %767
        %771 = vset.pattern.permute.xlu0 0
        %772 = vperm.xlu0 %771, %v686
        %v773 = vpop.permute.xlu0 %772
        %776 = vset.pattern.permute.xlu0 0
        %777 = vperm.xlu0 %776, %v687
        %v778 = vpop.permute.xlu0 %777
        %781 = vset.pattern.permute.xlu0 0
        %782 = vperm.xlu0 %781, %v688
        %v783 = vpop.permute.xlu0 %782
        %786 = vset.pattern.permute.xlu0 0
        %787 = vperm.xlu0 %786, %v689
        %v788 = vpop.permute.xlu0 %787
        %791 = vset.pattern.permute.xlu0 0
        %792 = vperm.xlu0 %791, %v690
        %v793 = vpop.permute.xlu0 %792
        %796 = vset.pattern.permute.xlu0 0
        %797 = vperm.xlu0 %796, %v691
        %v798 = vpop.permute.xlu0 %797
        %801 = vset.pattern.permute.xlu0 0
        %802 = vperm.xlu0 %801, %v692
        %v803 = vpop.permute.xlu0 %802
        %806 = vset.pattern.permute.xlu0 0
        %807 = vperm.xlu0 %806, %v693
        %v808 = vpop.permute.xlu0 %807
        %811 = vset.pattern.permute.xlu0 0
        %812 = vperm.xlu0 %811, %v694
        %v813 = vpop.permute.xlu0 %812
        %816 = vset.pattern.permute.xlu0 0
        %817 = vperm.xlu0 %816, %v695
        %v818 = vpop.permute.xlu0 %817
        %821 = vset.pattern.permute.xlu0 0
        %822 = vperm.xlu0 %821, %v696
        %v823 = vpop.permute.xlu0 %822
        %v825 = vsub.f32 %v485, %v748
        %v826 = vsub.f32 %v486, %v753
        %v827 = vsub.f32 %v487, %v758
        %v828 = vsub.f32 %v488, %v763
        %v829 = vsub.f32 %v489, %v768
        %v830 = vsub.f32 %v490, %v773
        %v831 = vsub.f32 %v491, %v778
        %v832 = vsub.f32 %v492, %v783
        %v833 = vsub.f32 %v493, %v788
        %v834 = vsub.f32 %v494, %v793
        %v835 = vsub.f32 %v495, %v798
        %v836 = vsub.f32 %v496, %v803
        %v837 = vsub.f32 %v497, %v808
        %v838 = vsub.f32 %v498, %v813
        %v839 = vsub.f32 %v499, %v818
        %v840 = vsub.f32 %v500, %v823
        %v841 = vmul.f32 %v825, 1.442695
        %v842 = vpow.pop %v841
        %v843 = vmul.f32 %v826, 1.442695
        %v844 = vpow.pop %v843
        %v845 = vmul.f32 %v827, 1.442695
        %v846 = vpow.pop %v845
        %v847 = vmul.f32 %v828, 1.442695
        %v848 = vpow.pop %v847
        %v849 = vmul.f32 %v829, 1.442695
        %v850 = vpow.pop %v849
        %v851 = vmul.f32 %v830, 1.442695
        %v852 = vpow.pop %v851
        %v853 = vmul.f32 %v831, 1.442695
        %v854 = vpow.pop %v853
        %v855 = vmul.f32 %v832, 1.442695
        %v856 = vpow.pop %v855
        %v857 = vmul.f32 %v833, 1.442695
        %v858 = vpow.pop %v857
        %v859 = vmul.f32 %v834, 1.442695
        %v860 = vpow.pop %v859
        %v861 = vmul.f32 %v835, 1.442695
        %v862 = vpow.pop %v861
        %v863 = vmul.f32 %v836, 1.442695
        %v864 = vpow.pop %v863
        %v865 = vmul.f32 %v837, 1.442695
        %v866 = vpow.pop %v865
        %v867 = vmul.f32 %v838, 1.442695
        %v868 = vpow.pop %v867
        %v869 = vmul.f32 %v839, 1.442695
        %v870 = vpow.pop %v869
        %v871 = vmul.f32 %v840, 1.442695
        %v872 = vpow.pop %v871
        %873 = vadd.xlane.f32.xlu0 %v842
        %v874 = vpop.xlane.xlu0 %873
        %875 = vadd.xlane.f32.xlu0 %v844
        %v876 = vpop.xlane.xlu0 %875
        %877 = vadd.xlane.f32.xlu0 %v846
        %v878 = vpop.xlane.xlu0 %877
        %879 = vadd.xlane.f32.xlu0 %v848
        %v880 = vpop.xlane.xlu0 %879
        %881 = vadd.xlane.f32.xlu0 %v850
        %v882 = vpop.xlane.xlu0 %881
        %883 = vadd.xlane.f32.xlu0 %v852
        %v884 = vpop.xlane.xlu0 %883
        %885 = vadd.xlane.f32.xlu0 %v854
        %v886 = vpop.xlane.xlu0 %885
        %887 = vadd.xlane.f32.xlu0 %v856
        %v888 = vpop.xlane.xlu0 %887
        %889 = vadd.xlane.f32.xlu0 %v858
        %v890 = vpop.xlane.xlu0 %889
        %891 = vadd.xlane.f32.xlu0 %v860
        %v892 = vpop.xlane.xlu0 %891
        %893 = vadd.xlane.f32.xlu0 %v862
        %v894 = vpop.xlane.xlu0 %893
        %895 = vadd.xlane.f32.xlu0 %v864
        %v896 = vpop.xlane.xlu0 %895
        %897 = vadd.xlane.f32.xlu0 %v866
        %v898 = vpop.xlane.xlu0 %897
        %899 = vadd.xlane.f32.xlu0 %v868
        %v900 = vpop.xlane.xlu0 %899
        %901 = vadd.xlane.f32.xlu0 %v870
        %v902 = vpop.xlane.xlu0 %901
        %903 = vadd.xlane.f32.xlu0 %v872
        %v904 = vpop.xlane.xlu0 %903
        %v905 = vld [vmem:[#allocation3] sm:$0xff]
        %v906 = vld [vmem:[#allocation3 + $0x8] sm:$0xff]
        %v907 = vld [vmem:[#allocation3 + $0x10] sm:$0xff]
        %v908 = vld [vmem:[#allocation3 + $0x18] sm:$0xff]
        %v909 = vld [vmem:[#allocation3 + $0x20] sm:$0xff]
        %v910 = vld [vmem:[#allocation3 + $0x28] sm:$0xff]
        %v911 = vld [vmem:[#allocation3 + $0x30] sm:$0xff]
        %v912 = vld [vmem:[#allocation3 + $0x38] sm:$0xff]
        %v913 = vld [vmem:[#allocation3 + $0x40] sm:$0xff]
        %v914 = vld [vmem:[#allocation3 + $0x48] sm:$0xff]
        %v915 = vld [vmem:[#allocation3 + $0x50] sm:$0xff]
        %v916 = vld [vmem:[#allocation3 + $0x58] sm:$0xff]
        %v917 = vld [vmem:[#allocation3 + $0x60] sm:$0xff]
        %v918 = vld [vmem:[#allocation3 + $0x68] sm:$0xff]
        %v919 = vld [vmem:[#allocation3 + $0x70] sm:$0xff]
        %v920 = vld [vmem:[#allocation3 + $0x78] sm:$0xff]
        %v921 = vmul.f32 %v714, %v905
        %v922 = vmul.f32 %v716, %v906
        %v923 = vmul.f32 %v718, %v907
        %v924 = vmul.f32 %v720, %v908
        %v925 = vmul.f32 %v722, %v909
        %v926 = vmul.f32 %v724, %v910
        %v927 = vmul.f32 %v726, %v911
        %v928 = vmul.f32 %v728, %v912
        %v929 = vmul.f32 %v730, %v913
        %v930 = vmul.f32 %v732, %v914
        %v931 = vmul.f32 %v734, %v915
        %v932 = vmul.f32 %v736, %v916
        %v933 = vmul.f32 %v738, %v917
        %v934 = vmul.f32 %v740, %v918
        %v935 = vmul.f32 %v742, %v919
        %v936 = vmul.f32 %v744, %v920
        %v937 = vadd.f32 %v921, %v874
        %v938 = vadd.f32 %v922, %v876
        %v939 = vadd.f32 %v923, %v878
        %v940 = vadd.f32 %v924, %v880
        %v941 = vadd.f32 %v925, %v882
        %v942 = vadd.f32 %v926, %v884
        %v943 = vadd.f32 %v927, %v886
        %v944 = vadd.f32 %v928, %v888
        %v945 = vadd.f32 %v929, %v890
        %v946 = vadd.f32 %v930, %v892
        %v947 = vadd.f32 %v931, %v894
        %v948 = vadd.f32 %v932, %v896
        %v949 = vadd.f32 %v933, %v898
        %v950 = vadd.f32 %v934, %v900
        %v951 = vadd.f32 %v935, %v902
        %v952 = vadd.f32 %v936, %v904
        %vm953 = vcmask 7168
        %954 = vst.msk [vmem:[#allocation3] sm:$0xff] %vm953, %v937
        %955 = vst.msk [vmem:[#allocation3 + $0x8] sm:$0xff] %vm953, %v938
        %956 = vst.msk [vmem:[#allocation3 + $0x10] sm:$0xff] %vm953, %v939
        %957 = vst.msk [vmem:[#allocation3 + $0x18] sm:$0xff] %vm953, %v940
        %958 = vst.msk [vmem:[#allocation3 + $0x20] sm:$0xff] %vm953, %v941
        %959 = vst.msk [vmem:[#allocation3 + $0x28] sm:$0xff] %vm953, %v942
        %960 = vst.msk [vmem:[#allocation3 + $0x30] sm:$0xff] %vm953, %v943
        %961 = vst.msk [vmem:[#allocation3 + $0x38] sm:$0xff] %vm953, %v944
        %962 = vst.msk [vmem:[#allocation3 + $0x40] sm:$0xff] %vm953, %v945
        %963 = vst.msk [vmem:[#allocation3 + $0x48] sm:$0xff] %vm953, %v946
        %964 = vst.msk [vmem:[#allocation3 + $0x50] sm:$0xff] %vm953, %v947
        %965 = vst.msk [vmem:[#allocation3 + $0x58] sm:$0xff] %vm953, %v948
        %966 = vst.msk [vmem:[#allocation3 + $0x60] sm:$0xff] %vm953, %v949
        %967 = vst.msk [vmem:[#allocation3 + $0x68] sm:$0xff] %vm953, %v950
        %968 = vst.msk [vmem:[#allocation3 + $0x70] sm:$0xff] %vm953, %v951
        %969 = vst.msk [vmem:[#allocation3 + $0x78] sm:$0xff] %vm953, %v952
        %970 = vst.msk [vmem:[#allocation2] sm:$0xff] %vm953, %v681
        %971 = vst.msk [vmem:[#allocation2 + $0x8] sm:$0xff] %vm953, %v682
        %972 = vst.msk [vmem:[#allocation2 + $0x10] sm:$0xff] %vm953, %v683
        %973 = vst.msk [vmem:[#allocation2 + $0x18] sm:$0xff] %vm953, %v684
        %974 = vst.msk [vmem:[#allocation2 + $0x20] sm:$0xff] %vm953, %v685
        %975 = vst.msk [vmem:[#allocation2 + $0x28] sm:$0xff] %vm953, %v686
        %976 = vst.msk [vmem:[#allocation2 + $0x30] sm:$0xff] %vm953, %v687
        %977 = vst.msk [vmem:[#allocation2 + $0x38] sm:$0xff] %vm953, %v688
        %978 = vst.msk [vmem:[#allocation2 + $0x40] sm:$0xff] %vm953, %v689
        %979 = vst.msk [vmem:[#allocation2 + $0x48] sm:$0xff] %vm953, %v690
        %980 = vst.msk [vmem:[#allocation2 + $0x50] sm:$0xff] %vm953, %v691
        %981 = vst.msk [vmem:[#allocation2 + $0x58] sm:$0xff] %vm953, %v692
        %982 = vst.msk [vmem:[#allocation2 + $0x60] sm:$0xff] %vm953, %v693
        %983 = vst.msk [vmem:[#allocation2 + $0x68] sm:$0xff] %vm953, %v694
        %984 = vst.msk [vmem:[#allocation2 + $0x70] sm:$0xff] %vm953, %v695
        %985 = vst.msk [vmem:[#allocation2 + $0x78] sm:$0xff] %vm953, %v696
        %p986 = scmp.eq.s32.totalorder %s29, 1
        // Predicated region
        $region41: #{tpu_custom_call.1} parent=27 // pred_check
          %p987 = pneg %p986
        $region42: #{tpu_custom_call.1} parent=27 // pred_check_branch
          %989 = sbr.rel (%p987) target = $region44
        $region43: #{tpu_custom_call.1} parent=27 // pred_region
          %v990 = vld [vmem:[#allocation2] sm:$0xff]
          %v991 = vld [vmem:[#allocation2 + $0x8] sm:$0xff]
          %v992 = vld [vmem:[#allocation2 + $0x10] sm:$0xff]
          %v993 = vld [vmem:[#allocation2 + $0x18] sm:$0xff]
          %v994 = vld [vmem:[#allocation2 + $0x20] sm:$0xff]
          %v995 = vld [vmem:[#allocation2 + $0x28] sm:$0xff]
          %v996 = vld [vmem:[#allocation2 + $0x30] sm:$0xff]
          %v997 = vld [vmem:[#allocation2 + $0x38] sm:$0xff]
          %v998 = vld [vmem:[#allocation2 + $0x40] sm:$0xff]
          %v999 = vld [vmem:[#allocation2 + $0x48] sm:$0xff]
          %v1000 = vld [vmem:[#allocation2 + $0x50] sm:$0xff]
          %v1001 = vld [vmem:[#allocation2 + $0x58] sm:$0xff]
          %v1002 = vld [vmem:[#allocation2 + $0x60] sm:$0xff]
          %v1003 = vld [vmem:[#allocation2 + $0x68] sm:$0xff]
          %v1004 = vld [vmem:[#allocation2 + $0x70] sm:$0xff]
          %v1005 = vld [vmem:[#allocation2 + $0x78] sm:$0xff]
          %v1006 = vld [vmem:[#allocation3] sm:$0xff]
          %v1007 = vld [vmem:[#allocation3 + $0x8] sm:$0xff]
          %v1008 = vld [vmem:[#allocation3 + $0x10] sm:$0xff]
          %v1009 = vld [vmem:[#allocation3 + $0x18] sm:$0xff]
          %v1010 = vld [vmem:[#allocation3 + $0x20] sm:$0xff]
          %v1011 = vld [vmem:[#allocation3 + $0x28] sm:$0xff]
          %v1012 = vld [vmem:[#allocation3 + $0x30] sm:$0xff]
          %v1013 = vld [vmem:[#allocation3 + $0x38] sm:$0xff]
          %v1014 = vld [vmem:[#allocation3 + $0x40] sm:$0xff]
          %v1015 = vld [vmem:[#allocation3 + $0x48] sm:$0xff]
          %v1016 = vld [vmem:[#allocation3 + $0x50] sm:$0xff]
          %v1017 = vld [vmem:[#allocation3 + $0x58] sm:$0xff]
          %v1018 = vld [vmem:[#allocation3 + $0x60] sm:$0xff]
          %v1019 = vld [vmem:[#allocation3 + $0x68] sm:$0xff]
          %v1020 = vld [vmem:[#allocation3 + $0x70] sm:$0xff]
          %v1021 = vld [vmem:[#allocation3 + $0x78] sm:$0xff]
          %v1022 = vlog2.pop %v1006
          %v1023 = vmul.f32 %v1022, 0.6931472
          %v1024 = vlog2.pop %v1007
          %v1025 = vmul.f32 %v1024, 0.6931472
          %v1026 = vlog2.pop %v1008
          %v1027 = vmul.f32 %v1026, 0.6931472
          %v1028 = vlog2.pop %v1009
          %v1029 = vmul.f32 %v1028, 0.6931472
          %v1030 = vlog2.pop %v1010
          %v1031 = vmul.f32 %v1030, 0.6931472
          %v1032 = vlog2.pop %v1011
          %v1033 = vmul.f32 %v1032, 0.6931472
          %v1034 = vlog2.pop %v1012
          %v1035 = vmul.f32 %v1034, 0.6931472
          %v1036 = vlog2.pop %v1013
          %v1037 = vmul.f32 %v1036, 0.6931472
          %v1038 = vlog2.pop %v1014
          %v1039 = vmul.f32 %v1038, 0.6931472
          %v1040 = vlog2.pop %v1015
          %v1041 = vmul.f32 %v1040, 0.6931472
          %v1042 = vlog2.pop %v1016
          %v1043 = vmul.f32 %v1042, 0.6931472
          %v1044 = vlog2.pop %v1017
          %v1045 = vmul.f32 %v1044, 0.6931472
          %v1046 = vlog2.pop %v1018
          %v1047 = vmul.f32 %v1046, 0.6931472
          %v1048 = vlog2.pop %v1019
          %v1049 = vmul.f32 %v1048, 0.6931472
          %v1050 = vlog2.pop %v1020
          %v1051 = vmul.f32 %v1050, 0.6931472
          %v1052 = vlog2.pop %v1021
          %v1053 = vmul.f32 %v1052, 0.6931472
          %v1054 = vadd.f32 %v990, %v1023
          %v1055 = vadd.f32 %v991, %v1025
          %v1056 = vadd.f32 %v992, %v1027
          %v1057 = vadd.f32 %v993, %v1029
          %v1058 = vadd.f32 %v994, %v1031
          %v1059 = vadd.f32 %v995, %v1033
          %v1060 = vadd.f32 %v996, %v1035
          %v1061 = vadd.f32 %v997, %v1037
          %v1062 = vadd.f32 %v998, %v1039
          %v1063 = vadd.f32 %v999, %v1041
          %v1064 = vadd.f32 %v1000, %v1043
          %v1065 = vadd.f32 %v1001, %v1045
          %v1066 = vadd.f32 %v1002, %v1047
          %v1067 = vadd.f32 %v1003, %v1049
          %v1068 = vadd.f32 %v1004, %v1051
          %v1069 = vadd.f32 %v1005, %v1053
          %1070 = vst.msk [vmem:[%s257] sm:$0xff] %vm953, %v1054
          %1071 = vst.msk [vmem:[%s257 + $0x8] sm:$0xff] %vm953, %v1055
          %1072 = vst.msk [vmem:[%s257 + $0x10] sm:$0xff] %vm953, %v1056
          %1073 = vst.msk [vmem:[%s257 + $0x18] sm:$0xff] %vm953, %v1057
          %1074 = vst.msk [vmem:[%s257 + $0x20] sm:$0xff] %vm953, %v1058
          %1075 = vst.msk [vmem:[%s257 + $0x28] sm:$0xff] %vm953, %v1059
          %1076 = vst.msk [vmem:[%s257 + $0x30] sm:$0xff] %vm953, %v1060
          %1077 = vst.msk [vmem:[%s257 + $0x38] sm:$0xff] %vm953, %v1061
          %1078 = vst.msk [vmem:[%s257 + $0x40] sm:$0xff] %vm953, %v1062
          %1079 = vst.msk [vmem:[%s257 + $0x48] sm:$0xff] %vm953, %v1063
          %1080 = vst.msk [vmem:[%s257 + $0x50] sm:$0xff] %vm953, %v1064
          %1081 = vst.msk [vmem:[%s257 + $0x58] sm:$0xff] %vm953, %v1065
          %1082 = vst.msk [vmem:[%s257 + $0x60] sm:$0xff] %vm953, %v1066
          %1083 = vst.msk [vmem:[%s257 + $0x68] sm:$0xff] %vm953, %v1067
          %1084 = vst.msk [vmem:[%s257 + $0x70] sm:$0xff] %vm953, %v1068
          %1085 = vst.msk [vmem:[%s257 + $0x78] sm:$0xff] %vm953, %v1069
        $region44: #{tpu_custom_call.1} parent=27 // pred_fallthru
          _
        %s1086 = smul.u32 16, %s28
        %p1087 = scmp.lt.s32.totalorder %s1086, 31
        %s1088 = scalar_select %p1087, %s1086, 31
        %s1089 = smul.addr %s1088, 8
        %s1090 = scalar_lea.vmem %s2, %s1089
        %s1091 = sand.u32 %s124, 1
        %s1092 = scalar_lea.sflag [#allocation6], %s1091
        %s1093 = sand.u32 %s124, 1
        %s1094 = smul.addr %s1093, 8
        %s1095 = scalar_lea.vmem [#allocation9], %s1094
        // Predicated region
        $region45: #{tpu_custom_call.1} parent=27 // pred_check
          %p1096 = pneg %p106
        $region46: #{tpu_custom_call.1} parent=27 // pred_check_branch
          %1098 = sbr.rel (%p1096) target = $region48
        $region47: #{tpu_custom_call.1} parent=27 // pred_region
          %s1099 = smul.u32 16, %s28
        $region48: #{tpu_custom_call.1} parent=27 // pred_fallthru
          _
        // Predicated region
        $region49: #{tpu_custom_call.1} parent=27 // pred_check
          %p1100 = pneg %p134
        $region50: #{tpu_custom_call.1} parent=27 // pred_check_branch
          %1102 = sbr.rel (%p1100) target = $region52
        $region51: #{tpu_custom_call.1} parent=27 // pred_region
          %s1104 = ssub.s32 128, 128
          %1105 = vsyncadd %s1092, %s1104
          %s1106 = smul.addr %s28, 2
          %s1107 = sadd.s32 %s29, %s1106
          %s1108 = smul.addr %s1107, 128
          %s1109 = scalar_lea.hbm %s3, %s1108
          %s1111 = sshll.u32 %s1095, 4
          %s1112 = int_to_ptr.vmem [resolvable:$true] %s1111
          %1114 = dma.vmem_to_hbm [thread:$0]  %s1112, 128, %s1109, %s1092
        $region52: #{tpu_custom_call.1} parent=27 // pred_fallthru
          _
      $region28: #{tpu_custom_call.1} parent=5 // pred_fallthru
        _
      %p1115 = scmp.le.s32.totalorder 2, %s19
      // Predicated region
      $region53: #{tpu_custom_call.1} parent=5 // pred_check
        %p1116 = pneg %p1115
      $region54: #{tpu_custom_call.1} parent=5 // pred_check_branch
        %1118 = sbr.rel (%p1116) target = $region56
      $region55: #{tpu_custom_call.1} parent=5 // pred_region
        %s1119 = ssub.s32 %s19, 2
        // Predicated region
        $region57: #{tpu_custom_call.1} parent=55 // pred_check
          %p1120 = pneg %p112
        $region58: #{tpu_custom_call.1} parent=55 // pred_check_branch
          %1122 = sbr.rel (%p1120) target = $region60
        $region59: #{tpu_custom_call.1} parent=55 // pred_region
          %s1123 = smul.u32 16, %s30
          %p1124 = scmp.lt.s32.totalorder %s1123, 31
          %s1125 = scalar_select %p1124, %s1123, 31
          %s1126 = smul.addr %s1125, 8
          %s1127 = scalar_lea.vmem %s2, %s1126
        $region60: #{tpu_custom_call.1} parent=55 // pred_fallthru
          _
        // Predicated region
        $region61: #{tpu_custom_call.1} parent=55 // pred_check
          %p1128 = pneg %p140
        $region62: #{tpu_custom_call.1} parent=55 // pred_check_branch
          %1130 = sbr.rel (%p1128) target = $region64
        $region63: #{tpu_custom_call.1} parent=55 // pred_region
          %s1131 = sand.u32 %s125, 1
          %s1132 = scalar_lea.sflag [#allocation6], %s1131
          %s1133 = sand.u32 %s125, 1
          %s1134 = smul.addr %s1133, 8
          %s1135 = scalar_lea.vmem [#allocation9], %s1134
          %1136 = dma.done %s1132, 128
        $region64: #{tpu_custom_call.1} parent=55 // pred_fallthru
          _
      $region56: #{tpu_custom_call.1} parent=5 // pred_fallthru
        _
    $region6: #{tpu_custom_call.1} parent=1 // loop_footer
      %s23 = sadd.s32 1, %s19
    $region7: #{tpu_custom_call.1} parent=1 // loop_footer_branch
      %18 = sbr.rel target = $region3
    $region8: #{tpu_custom_call.1} parent=1 // loop_exit
      _
    %1137 = vsyncpa [#allocation5], 1
    %s1138 = scalar_lea.sflag [#allocation5], 1
    %1139 = vsyncpa %s1138, 1
    %1140 = vsyncpa [#allocation8], 1
    %s1141 = scalar_lea.sflag [#allocation8], 1
    %1142 = vsyncpa %s1141, 1
    %1143 = vsyncpa [#allocation6], 1
    %s1144 = scalar_lea.sflag [#allocation6], 1
    %1145 = vsyncpa %s1144, 1

</llo_original>
